<compile_context>
chip_gen: v5e
topology: v5e:2x2
jax: 0.10.0
libtpu: 0.0.40
codegen_flags: <defaults>
</compile_context>

<pallas_src>
import jax
import jax.numpy as jnp
from jax.experimental import pallas as pl
from jax.experimental.pallas import tpu as pltpu

ROWS, COLS = 49, 800
_BYTES = ROWS * COLS * 4  # f32


def _identity_kernel(w_ref, o_ref):
    # Forward pass: return the parameter tensor unchanged.
    o_ref[...] = w_ref[...]


def model_forward_direct(weights: jax.Array) -> jax.Array:
    """Preferred path: forward() is a pure identity — just return the param."""
    return weights


def model_forward(weights: jax.Array) -> jax.Array:
    """Pallas-kernel path (kept for the exercise): identity materialization of
    the parameter with input->output aliasing so no extra HBM buffer is used."""
    assert weights.shape == (ROWS, COLS)
    return pl.pallas_call(
        _identity_kernel,
        out_shape=jax.ShapeDtypeStruct((ROWS, COLS), weights.dtype),
        # Single invocation, whole array resident in VMEM; no grid machinery.
        in_specs=[pl.BlockSpec(memory_space=pltpu.MemorySpace.VMEM)],
        out_specs=pl.BlockSpec(memory_space=pltpu.MemorySpace.VMEM),
        # Output aliases the (donated) input parameter buffer.
        input_output_aliases={0: 0},
        # Tell XLA this is memcpy-sized so it does not over-serialize around it.
        cost_estimate=pl.CostEstimate(
            flops=0, transcendentals=0, bytes_accessed=2 * _BYTES
        ),
    )(weights)


# Donate the parameter buffer so the aliasing is realized end-to-end (no copy
# inserted at the jit boundary).
_model_forward_jit = jax.jit(model_forward, donate_argnums=(0,))


def init_params(key: jax.Array) -> jax.Array:
    """Deterministic re-implementation of
    torch.distributions.Uniform(0, 0.1).sample((49, 800)) using JAX PRNG."""
    # TODO(synk): values will not bit-match a torch-seeded Uniform sample; this
    # is an init reproducibility difference only, forward() itself is exact.
    return jax.random.uniform(
        key, (ROWS, COLS), dtype=jnp.float32, minval=0.0, maxval=0.1
    )


if __name__ == "__main__":
    key = jax.random.PRNGKey(0)
    weights = init_params(key)

    # `weights` is donated to the kernel call; regenerate an independent copy
    # for the correctness check (init is deterministic in the key).
    expected = init_params(key)

    out = _model_forward_jit(weights)
    out = jax.block_until_ready(out)

    assert out.shape == (ROWS, COLS), out.shape
    assert out.dtype == jnp.float32, out.dtype
    assert bool(jnp.array_equal(out, expected)), "kernel output mismatch"

    # Sanity-check the recommended no-kernel path as well.
    direct = jax.block_until_ready(model_forward_direct(expected))
    assert bool(jnp.array_equal(direct, expected))

    print("KERNEL_OK")
</pallas_src>

<mosaic_0001>
module attributes {stable_mosaic.version = 11 : i64} {
  func.func @_identity_kernel(%arg0: memref<49x800xf32, #tpu.memory_space<vmem>>, %arg1: memref<49x800xf32, #tpu.memory_space<vmem>>) attributes {dimension_semantics = [], scalar_prefetch = 0 : i64, scratch_operands = 0 : i64, tpu.core_type = #tpu.core_type<tc>} {
    %c0 = arith.constant 0 : index
    %c0_0 = arith.constant 0 : index
    %0 = vector.load %arg0[%c0, %c0_0] : memref<49x800xf32, #tpu.memory_space<vmem>>, vector<49x800xf32>
    %c0_1 = arith.constant 0 : index
    %c0_2 = arith.constant 0 : index
    %1 = vector.load %arg1[%c0_1, %c0_2] : memref<49x800xf32, #tpu.memory_space<vmem>>, vector<49x800xf32>
    tpu.vector_store %arg1[%c0_1, %c0_2], %0 {strides = array<i32>} : memref<49x800xf32, #tpu.memory_space<vmem>>, vector<49x800xf32>,
    return
  }
}

</mosaic_0001>

<llo_original>
// kernel: model_forward.1
$region0: #{model_forward.1}
  #allocation0 [shape = 'u32[]', space=smem, size = 0x4, offset = 0x4, fixed_abs, tag = 'smem constant byte address 0x4 - core index']
  #allocation1 [shape = 'u32[72,128]{1,0:T(1,128)}', space=vmem, size = 0x9000, scoped, tag = 'internal scratch']
  %s0 = inlined_call_operand.hbm [shape: f32[49,800], index: 0, kind: input, shape index: {}, may-alias: {0,1}]
  %s1 = inlined_call_operand.hbm [shape: f32[49,800], index: 1, kind: output, shape index: {}, may-alias: {0,1}]
  %s2 = sld [smem:[#allocation0]]
  $region18: #{model_forward.1} parent=0
    _
  %s4 = ssub.s32 1, %s2
  %s5 = scalar_select 0, %s4, %s2
  $region1: #{model_forward.1} parent=0
    #allocation2 [shape = 'u8[200704]{0}', space=vmem, size = 0x31000, scoped, tag = 'input window, operand 0, single buffered']
    #allocation3 [shape = 's32[1]{0}', space=sflag, size = 0x4, scoped, tag = 'scoped memory for model_forward.1']
    #allocation4 [shape = 's32[1]{0}', space=sflag, size = 0x4, scoped, tag = 'scoped memory for model_forward.1']
    #allocation5 [shape = 'u8[200704]{0}', space=vmem, size = 0x31000, scoped, tag = 'output window, operand 0, single buffered']
    %6 = vsyncpa [#allocation3], 0
    %7 = vsyncpa [#allocation4], 0
    // Predicated region
    $region2: #{model_forward.1} parent=1 // pred_check
      _
    $region3: #{model_forward.1} parent=1 // pred_check_branch
      %9 = sbr.rel (0) target = $region5
    $region4: #{model_forward.1} parent=1 // pred_region
      %11 = vsyncadd [#allocation3], 0
      %s12 = sshll.u32 %s0, 4
      %s13 = int_to_ptr.hbm [resolvable:$true] %s12
      %s14 = sshll.u32 [#allocation2], 4
      %s15 = int_to_ptr.vmem [resolvable:$true] %s14
      %20 = dma.hbm_to_vmem [thread:$0]  %s13, 6272, %s15, [#allocation3], 896, 896, 56
    $region5: #{model_forward.1} parent=1 // pred_fallthru
      _
    // Predicated region
    $region6: #{model_forward.1} parent=1 // pred_check
      _
    $region7: #{model_forward.1} parent=1 // pred_check_branch
      %22 = sbr.rel (0) target = $region9
    $region8: #{model_forward.1} parent=1 // pred_region
      %24 = dma.done [#allocation3], 6272
    $region9: #{model_forward.1} parent=1 // pred_fallthru
      _
    %v25 = vld [vmem:[#allocation2] sm:$0xff]
    %v26 = vld [vmem:[#allocation2 + $0x8] sm:$0xff]
    %v27 = vld [vmem:[#allocation2 + $0x10] sm:$0xff]
    %v28 = vld [vmem:[#allocation2 + $0x18] sm:$0xff]
    %v29 = vld [vmem:[#allocation2 + $0x20] sm:$0xff]
    %v30 = vld [vmem:[#allocation2 + $0x28] sm:$0xff]
    %v31 = vld [vmem:[#allocation2 + $0x30] sm:$0xff]
    %v32 = vld [vmem:[#allocation2 + $0x38] sm:$0xff]
    %v33 = vld [vmem:[#allocation2 + $0x40] sm:$0xff]
    %v34 = vld [vmem:[#allocation2 + $0x48] sm:$0xff]
    %v35 = vld [vmem:[#allocation2 + $0x50] sm:$0xff]
    %v36 = vld [vmem:[#allocation2 + $0x58] sm:$0xff]
    %v37 = vld [vmem:[#allocation2 + $0x60] sm:$0xff]
    %v38 = vld [vmem:[#allocation2 + $0x68] sm:$0xff]
    %v39 = vld [vmem:[#allocation2 + $0x70] sm:$0xff]
    %v40 = vld [vmem:[#allocation2 + $0x78] sm:$0xff]
    %v41 = vld [vmem:[#allocation2 + $0x80] sm:$0xff]
    %v42 = vld [vmem:[#allocation2 + $0x88] sm:$0xff]
    %v43 = vld [vmem:[#allocation2 + $0x90] sm:$0xff]
    %v44 = vld [vmem:[#allocation2 + $0x98] sm:$0xff]
    %v45 = vld [vmem:[#allocation2 + $0xa0] sm:$0xff]
    %v46 = vld [vmem:[#allocation2 + $0xa8] sm:$0xff]
    %v47 = vld [vmem:[#allocation2 + $0xb0] sm:$0xff]
    %v48 = vld [vmem:[#allocation2 + $0xb8] sm:$0xff]
    %v49 = vld [vmem:[#allocation2 + $0xc0] sm:$0xff]
    %v50 = vld [vmem:[#allocation2 + $0xc8] sm:$0xff]
    %v51 = vld [vmem:[#allocation2 + $0xd0] sm:$0xff]
    %v52 = vld [vmem:[#allocation2 + $0xd8] sm:$0xff]
    %v53 = vld [vmem:[#allocation2 + $0xe0] sm:$0xff]
    %v54 = vld [vmem:[#allocation2 + $0xe8] sm:$0xff]
    %v55 = vld [vmem:[#allocation2 + $0xf0] sm:$0xff]
    %v56 = vld [vmem:[#allocation2 + $0xf8] sm:$0xff]
    %v57 = vld [vmem:[#allocation2 + $0x100] sm:$0xff]
    %v58 = vld [vmem:[#allocation2 + $0x108] sm:$0xff]
    %v59 = vld [vmem:[#allocation2 + $0x110] sm:$0xff]
    %v60 = vld [vmem:[#allocation2 + $0x118] sm:$0xff]
    %v61 = vld [vmem:[#allocation2 + $0x120] sm:$0xff]
    %v62 = vld [vmem:[#allocation2 + $0x128] sm:$0xff]
    %v63 = vld [vmem:[#allocation2 + $0x130] sm:$0xff]
    %v64 = vld [vmem:[#allocation2 + $0x138] sm:$0xff]
    %v65 = vld [vmem:[#allocation2 + $0x140] sm:$0xff]
    %v66 = vld [vmem:[#allocation2 + $0x148] sm:$0xff]
    %v67 = vld [vmem:[#allocation2 + $0x150] sm:$0x1]
    %v68 = vld [vmem:[#allocation2 + $0x158] sm:$0x1]
    %v69 = vld [vmem:[#allocation2 + $0x160] sm:$0x1]
    %v70 = vld [vmem:[#allocation2 + $0x168] sm:$0x1]
    %v71 = vld [vmem:[#allocation2 + $0x170] sm:$0x1]
    %v72 = vld [vmem:[#allocation2 + $0x178] sm:$0x1]
    %v73 = vld [vmem:[#allocation2 + $0x180] sm:$0x1]
    %74 = vst [vmem:[#allocation5] sm:$0xff] %v25
    %75 = vst [vmem:[#allocation5 + $0x8] sm:$0xff] %v26
    %76 = vst [vmem:[#allocation5 + $0x10] sm:$0xff] %v27
    %77 = vst [vmem:[#allocation5 + $0x18] sm:$0xff] %v28
    %78 = vst [vmem:[#allocation5 + $0x20] sm:$0xff] %v29
    %79 = vst [vmem:[#allocation5 + $0x28] sm:$0xff] %v30
    %vm80 = vcmask 261120
    %81 = vst.msk [vmem:[#allocation5 + $0x30] sm:$0xff] %vm80, %v31
    %82 = vst [vmem:[#allocation5 + $0x38] sm:$0xff] %v32
    %83 = vst [vmem:[#allocation5 + $0x40] sm:$0xff] %v33
    %84 = vst [vmem:[#allocation5 + $0x48] sm:$0xff] %v34
    %85 = vst [vmem:[#allocation5 + $0x50] sm:$0xff] %v35
    %86 = vst [vmem:[#allocation5 + $0x58] sm:$0xff] %v36
    %87 = vst [vmem:[#allocation5 + $0x60] sm:$0xff] %v37
    %88 = vst.msk [vmem:[#allocation5 + $0x68] sm:$0xff] %vm80, %v38
    %89 = vst [vmem:[#allocation5 + $0x70] sm:$0xff] %v39
    %90 = vst [vmem:[#allocation5 + $0x78] sm:$0xff] %v40
    %91 = vst [vmem:[#allocation5 + $0x80] sm:$0xff] %v41
    %92 = vst [vmem:[#allocation5 + $0x88] sm:$0xff] %v42
    %93 = vst [vmem:[#allocation5 + $0x90] sm:$0xff] %v43
    %94 = vst [vmem:[#allocation5 + $0x98] sm:$0xff] %v44
    %95 = vst.msk [vmem:[#allocation5 + $0xa0] sm:$0xff] %vm80, %v45
    %96 = vst [vmem:[#allocation5 + $0xa8] sm:$0xff] %v46
    %97 = vst [vmem:[#allocation5 + $0xb0] sm:$0xff] %v47
    %98 = vst [vmem:[#allocation5 + $0xb8] sm:$0xff] %v48
    %99 = vst [vmem:[#allocation5 + $0xc0] sm:$0xff] %v49
    %100 = vst [vmem:[#allocation5 + $0xc8] sm:$0xff] %v50
    %101 = vst [vmem:[#allocation5 + $0xd0] sm:$0xff] %v51
    %102 = vst.msk [vmem:[#allocation5 + $0xd8] sm:$0xff] %vm80, %v52
    %103 = vst [vmem:[#allocation5 + $0xe0] sm:$0xff] %v53
    %104 = vst [vmem:[#allocation5 + $0xe8] sm:$0xff] %v54
    %105 = vst [vmem:[#allocation5 + $0xf0] sm:$0xff] %v55
    %106 = vst [vmem:[#allocation5 + $0xf8] sm:$0xff] %v56
    %107 = vst [vmem:[#allocation5 + $0x100] sm:$0xff] %v57
    %108 = vst [vmem:[#allocation5 + $0x108] sm:$0xff] %v58
    %109 = vst.msk [vmem:[#allocation5 + $0x110] sm:$0xff] %vm80, %v59
    %110 = vst [vmem:[#allocation5 + $0x118] sm:$0xff] %v60
    %111 = vst [vmem:[#allocation5 + $0x120] sm:$0xff] %v61
    %112 = vst [vmem:[#allocation5 + $0x128] sm:$0xff] %v62
    %113 = vst [vmem:[#allocation5 + $0x130] sm:$0xff] %v63
    %114 = vst [vmem:[#allocation5 + $0x138] sm:$0xff] %v64
    %115 = vst [vmem:[#allocation5 + $0x140] sm:$0xff] %v65
    %116 = vst.msk [vmem:[#allocation5 + $0x148] sm:$0xff] %vm80, %v66
    %117 = vst [vmem:[#allocation5 + $0x150] sm:$0x1] %v67
    %118 = vst [vmem:[#allocation5 + $0x158] sm:$0x1] %v68
    %119 = vst [vmem:[#allocation5 + $0x160] sm:$0x1] %v69
    %120 = vst [vmem:[#allocation5 + $0x168] sm:$0x1] %v70
    %121 = vst [vmem:[#allocation5 + $0x170] sm:$0x1] %v71
    %122 = vst [vmem:[#allocation5 + $0x178] sm:$0x1] %v72
    %vm123 = vcmask 253952
    %124 = vst.msk [vmem:[#allocation5 + $0x180] sm:$0x1] %vm123, %v73
    // Predicated region
    $region10: #{model_forward.1} parent=1 // pred_check
      _
    $region11: #{model_forward.1} parent=1 // pred_check_branch
      %126 = sbr.rel (0) target = $region13
    $region12: #{model_forward.1} parent=1 // pred_region
      %128 = vsyncadd [#allocation4], 0
      %s129 = sshll.u32 [#allocation5], 4
      %s130 = int_to_ptr.vmem [resolvable:$true] %s129
      %s131 = sshll.u32 %s1, 4
      %s132 = int_to_ptr.hbm [resolvable:$true] %s131
      %137 = dma.vmem_to_hbm [thread:$0]  %s130, 6272, %s132, [#allocation4], 896, 896, 56
    $region13: #{model_forward.1} parent=1 // pred_fallthru
      _
    // Predicated region
    $region14: #{model_forward.1} parent=1 // pred_check
      _
    $region15: #{model_forward.1} parent=1 // pred_check_branch
      %139 = sbr.rel (0) target = $region17
    $region16: #{model_forward.1} parent=1 // pred_region
      %141 = dma.done [#allocation4], 6272
    $region17: #{model_forward.1} parent=1 // pred_fallthru
      _
    %142 = vsyncpa [#allocation3], 1
    %143 = vsyncpa [#allocation4], 1

</llo_original>
